<compile_context>
chip_gen: v7x
topology: tpu7x:2x2x1
jax: 0.10.0
libtpu: 0.0.40
codegen_flags: <defaults>
</compile_context>

<pallas_src>
import functools

import jax
import jax.numpy as jnp
from jax import lax
from jax.experimental import pallas as pl
from jax.experimental.pallas import tpu as pltpu


def _int_pow(x, n):
    """x**n for small static non-negative integer n via repeated multiplies (VPU only)."""
    result = None
    base = x
    while n > 0:
        if n & 1:
            result = base if result is None else result * base
        n >>= 1
        if n:
            base = base * base
    return jnp.ones_like(x) if result is None else result


def _focal_loss_kernel(x_ref, t_ref, o_ref, *,
                       focus_param, pos_weight, block_rows,
                       rows_in_last, mask_last, num_tiles):
    """One row-tile per grid step; writes an (8, C) partial sum to its own output block."""
    i = pl.program_id(0)

    x = x_ref[...].astype(jnp.float32)
    t = t_ref[...].astype(jnp.float32)

    # One exp(-|x|) shared by the stable softplus and the sigmoid.
    e = jnp.exp(-jnp.abs(x))
    softplus_neg_x = jnp.log1p(e) + jnp.maximum(-x, 0.0)

    one_minus_t = 1.0 - t

    # BCE-with-logits (PyTorch semantics, scalar pos_weight broadcast on classes):
    #   bce = (1-t)*x + (1 + (pw-1)*t) * softplus(-x)
    if float(pos_weight) == 1.0:           # trace-time fast path (no pos_weight)
        bce = one_minus_t * x + softplus_neg_x
    else:
        w = 1.0 + (float(pos_weight) - 1.0) * t
        bce = one_minus_t * x + w * softplus_neg_x

    # sigmoid(x) and 1-sigmoid(x) from the shared exp; exact reciprocal for parity.
    r = pl.reciprocal(1.0 + e, approx=False)
    pos = x >= 0.0
    p = jnp.where(pos, r, e * r)           # sigmoid(x)
    q = jnp.where(pos, e * r, r)           # 1 - sigmoid(x)

    # Focal factor: integer gamma -> pure VPU multiplies (no pow/exp/log).
    if float(focus_param) == int(focus_param) and int(focus_param) >= 0:
        g = int(focus_param)
        focal = t * _int_pow(q, g) + one_minus_t * _int_pow(p, g)
    else:
        p_c = jnp.clip(p, 1e-30, 1.0)
        q_c = jnp.clip(q, 1e-30, 1.0)
        focal = t * q_c ** focus_param + one_minus_t * p_c ** focus_param

    vals = bce * focal
    n_cols = vals.shape[1]

    def write_partial(v):
        # (block_rows, C) -> (block_rows//8, 8, C) is sublane-aligned; the
        # axis-0 sum is plain VPU adds producing the (8, C) output block.
        o_ref[...] = jnp.sum(v.reshape(block_rows // 8, 8, n_cols), axis=0)

    if mask_last:
        # Only the last tile can contain out-of-range rows; interior tiles
        # take the unmasked path (saves the iota/compare/select per element).
        @pl.when(i == num_tiles - 1)
        def _():
            row_ids = lax.broadcasted_iota(jnp.int32, vals.shape, 0)
            write_partial(jnp.where(row_ids < rows_in_last, vals, 0.0))

        @pl.when(i != num_tiles - 1)
        def _():
            write_partial(vals)
    else:
        write_partial(vals)


def focal_loss(logits, target, focus_param=2, pos_weight=None, block_rows=8192):
    """Pallas sigmoid focal loss. logits/target: (B, C) float32 or bfloat16. Returns scalar f32."""
    B, C = logits.shape
    assert target.shape == (B, C)
    pw = 1.0 if pos_weight is None else float(pos_weight)

    # Internal lane padding of the last dim (VMEM footprint only; no HBM pad copy).
    C_lanes = ((C + 127) // 128) * 128

    # Generation-aware per-input tile budget + explicit scoped-VMEM limit.
    try:
        info = pltpu.get_tpu_info()
        vmem_bytes = int(getattr(info, "vmem_capacity_bytes", 64 * 2**20))
    except Exception:  # not on TPU / API change: assume the smallest (v7x-like) VMEM
        vmem_bytes = 64 * 2**20
    big_vmem = vmem_bytes >= 96 * 2**20          # v5e/v6e: 128 MiB; v7x: 64 MiB
    per_input_tile_budget = (4 if big_vmem else 2) * 2**20
    vmem_limit = int(min(vmem_bytes * 3 // 4, 96 * 2**20))

    # 16-bit inputs pack two rows per sublane -> quantize the row tile to 16.
    itemsizes = (jnp.dtype(logits.dtype).itemsize, jnp.dtype(target.dtype).itemsize)
    row_quant = 16 if min(itemsizes) < 4 else 8

    max_rows = per_input_tile_budget // (C_lanes * 4)
    max_rows = max(row_quant, (max_rows // row_quant) * row_quant)
    # Cap by B rounded DOWN (>= row_quant) so blocks never exceed the array rows
    # when B >= row_quant; the partial last block is masked in-kernel.
    b_cap = max(row_quant, (B // row_quant) * row_quant)
    block_rows = max(row_quant,
                     (min(block_rows, max_rows, b_cap) // row_quant) * row_quant)
    assert block_rows % 8 == 0

    num_tiles = (B + block_rows - 1) // block_rows
    mask_last = (B % block_rows) != 0
    rows_in_last = B - (num_tiles - 1) * block_rows

    kern = functools.partial(
        _focal_loss_kernel,
        focus_param=focus_param,
        pos_weight=pw,
        block_rows=block_rows,
        rows_in_last=rows_in_last,
        mask_last=mask_last,
        num_tiles=num_tiles,
    )

    partials = pl.pallas_call(
        kern,
        out_shape=jax.ShapeDtypeStruct((num_tiles * 8, C), jnp.float32),
        grid_spec=pltpu.PrefetchScalarGridSpec(
            num_scalar_prefetch=0,
            grid=(num_tiles,),
            in_specs=[
                pl.BlockSpec((block_rows, C), lambda i: (i, 0)),
                pl.BlockSpec((block_rows, C), lambda i: (i, 0)),
            ],
            out_specs=pl.BlockSpec((8, C), lambda i: (i, 0)),
        ),
        compiler_params=pltpu.CompilerParams(
            dimension_semantics=("parallel",),   # independent tiles -> megacore-splittable
            vmem_limit_bytes=vmem_limit,
        ),
    )(logits, target)

    # Tiny XLA epilogue: sum the (num_tiles*8, C) partials and take the mean.
    return jnp.sum(partials) / float(B * C)


def _focal_loss_ref(logits, target, focus_param=2, pos_weight=None):
    """Pure-JAX reference mirroring the PyTorch module."""
    pw = 1.0 if pos_weight is None else float(pos_weight)
    logits = logits.astype(jnp.float32)
    target = target.astype(jnp.float32)
    sp_neg = jnp.log1p(jnp.exp(-jnp.abs(logits))) + jnp.maximum(-logits, 0.0)
    w = 1.0 + (pw - 1.0) * target
    bce = (1.0 - target) * logits + w * sp_neg
    p = jax.nn.sigmoid(logits)
    focal = target * (1.0 - p) ** focus_param + (1.0 - target) * p ** focus_param
    return jnp.mean(bce * focal)


if __name__ == "__main__":
    focus_param = 2
    pos_weight = 1.5

    key = jax.random.PRNGKey(0)
    k_x, k_t, k_x2, k_t2 = jax.random.split(key, 4)

    # Case 1: non-aligned shape, f32 inputs, pos_weight path.
    # Exercises multiple tiles + the masked partial-last-tile path (no jnp.pad anywhere).
    B, C = 19, 100
    logits = jax.random.normal(k_x, (B, C), dtype=jnp.float32) * 2.0
    target = (jax.random.uniform(k_t, (B, C)) > 0.5).astype(jnp.float32)
    loss = focal_loss(logits, target, focus_param=focus_param, pos_weight=pos_weight)
    loss = jax.block_until_ready(loss)
    ref = _focal_loss_ref(logits, target, focus_param=focus_param, pos_weight=pos_weight)
    assert jnp.abs(loss - ref) < 2e-5 * (1.0 + jnp.abs(ref)), (loss, ref)

    # Case 2: bf16 targets (exact for 0/1 labels -> half the HBM read bytes),
    # aligned shape, no pos_weight (trace-time fast path).
    B2, C2 = 32, 128
    logits2 = jax.random.normal(k_x2, (B2, C2), dtype=jnp.float32)
    target2 = (jax.random.uniform(k_t2, (B2, C2)) > 0.5).astype(jnp.bfloat16)
    loss2 = focal_loss(logits2, target2, focus_param=focus_param)
    loss2 = jax.block_until_ready(loss2)
    ref2 = _focal_loss_ref(logits2, target2, focus_param=focus_param)
    assert jnp.abs(loss2 - ref2) < 2e-5 * (1.0 + jnp.abs(ref2)), (loss2, ref2)

    print("KERNEL_OK")
</pallas_src>

<mosaic_0001>
module attributes {stable_mosaic.version = 11 : i64} {
  func.func @_focal_loss_kernel(%arg0: i32, %arg1: memref<16x100xf32, #tpu.memory_space<vmem>>, %arg2: memref<16x100xf32, #tpu.memory_space<vmem>>, %arg3: memref<8x100xf32, #tpu.memory_space<vmem>>) attributes {dimension_semantics = [#tpu.dimension_semantics<parallel>], iteration_bounds = array<i64: 2>, scalar_prefetch = 0 : i64, scratch_operands = 0 : i64, tpu.core_type = #tpu.core_type<tc>, window_params = [{transform_indices = @transform_0, window_bounds = array<i64: 16, 100>}, {transform_indices = @transform_1, window_bounds = array<i64: 16, 100>}, {transform_indices = @transform_2, window_bounds = array<i64: 8, 100>}]} {
    %c0 = arith.constant 0 : index
    %c0_0 = arith.constant 0 : index
    %0 = vector.load %arg1[%c0, %c0_0] : memref<16x100xf32, #tpu.memory_space<vmem>>, vector<16x100xf32>
    %c0_1 = arith.constant 0 : index
    %c0_2 = arith.constant 0 : index
    %1 = vector.load %arg2[%c0_1, %c0_2] : memref<16x100xf32, #tpu.memory_space<vmem>>, vector<16x100xf32>
    %2 = math.absf %0 : vector<16x100xf32>
    %cst = arith.constant 0.000000e+00 : f32
    %3 = vector.broadcast %cst : f32 to vector<16x100xf32>
    %4 = arith.subf %3, %2 : vector<16x100xf32>
    %5 = math.exp %4 : vector<16x100xf32>
    %6 = math.log1p %5 : vector<16x100xf32>
    %cst_3 = arith.constant 0.000000e+00 : f32
    %7 = vector.broadcast %cst_3 : f32 to vector<16x100xf32>
    %8 = arith.subf %7, %0 : vector<16x100xf32>
    %cst_4 = arith.constant 0.000000e+00 : f32
    %9 = vector.broadcast %cst_4 : f32 to vector<16x100xf32>
    %10 = arith.maximumf %8, %9 : vector<16x100xf32>
    %11 = arith.addf %6, %10 : vector<16x100xf32>
    %cst_5 = arith.constant 1.000000e+00 : f32
    %12 = vector.broadcast %cst_5 : f32 to vector<16x100xf32>
    %13 = arith.subf %12, %1 : vector<16x100xf32>
    %cst_6 = arith.constant 5.000000e-01 : f32
    %14 = vector.broadcast %cst_6 : f32 to vector<16x100xf32>
    %15 = arith.mulf %14, %1 : vector<16x100xf32>
    %cst_7 = arith.constant 1.000000e+00 : f32
    %16 = vector.broadcast %cst_7 : f32 to vector<16x100xf32>
    %17 = arith.addf %16, %15 : vector<16x100xf32>
    %18 = arith.mulf %13, %0 : vector<16x100xf32>
    %19 = arith.mulf %17, %11 : vector<16x100xf32>
    %20 = arith.addf %18, %19 : vector<16x100xf32>
    %cst_8 = arith.constant 1.000000e+00 : f32
    %21 = vector.broadcast %cst_8 : f32 to vector<16x100xf32>
    %22 = arith.addf %21, %5 : vector<16x100xf32>
    %23 = tpu.reciprocal %22 : vector<16x100xf32> -> vector<16x100xf32>
    %cst_9 = arith.constant 0.000000e+00 : f32
    %24 = vector.broadcast %cst_9 : f32 to vector<16x100xf32>
    %25 = arith.cmpf oge, %0, %24 : vector<16x100xf32>
    %26 = arith.mulf %5, %23 : vector<16x100xf32>
    %27 = arith.select %25, %23, %26 : vector<16x100xi1>, vector<16x100xf32>
    %28 = arith.mulf %5, %23 : vector<16x100xf32>
    %29 = arith.select %25, %28, %23 : vector<16x100xi1>, vector<16x100xf32>
    %30 = arith.mulf %29, %29 : vector<16x100xf32>
    %31 = arith.mulf %1, %30 : vector<16x100xf32>
    %32 = arith.mulf %27, %27 : vector<16x100xf32>
    %33 = arith.mulf %13, %32 : vector<16x100xf32>
    %34 = arith.addf %31, %33 : vector<16x100xf32>
    %35 = arith.mulf %20, %34 : vector<16x100xf32>
    %c1_i32 = arith.constant 1 : i32
    %36 = arith.cmpi eq, %arg0, %c1_i32 : i32
    %37 = arith.extui %36 : i1 to i32
    %c0_i32 = arith.constant 0 : i32
    %38 = arith.cmpi ne, %37, %c0_i32 : i32
    scf.if %38 {
      %42 = tpu.iota {dimensions = array<i32: 0>} : vector<16x100xi32>
      %c3_i32 = arith.constant 3 : i32
      %43 = vector.broadcast %c3_i32 : i32 to vector<16x100xi32>
      %44 = arith.cmpi slt, %42, %43 : vector<16x100xi32>
      %cst_12 = arith.constant 0.000000e+00 : f32
      %45 = vector.broadcast %cst_12 : f32 to vector<16x100xf32>
      %46 = arith.select %44, %35, %45 : vector<16x100xi1>, vector<16x100xf32>
      %47 = vector.shape_cast %46 : vector<16x100xf32> to vector<2x8x100xf32>
      %cst_13 = arith.constant dense<0.000000e+00> : vector<8x100xf32>
      %48 = vector.multi_reduction <add>, %47, %cst_13 [0] : vector<2x8x100xf32> to vector<8x100xf32>
      %c0_14 = arith.constant 0 : index
      %c0_15 = arith.constant 0 : index
      %49 = vector.load %arg3[%c0_14, %c0_15] : memref<8x100xf32, #tpu.memory_space<vmem>>, vector<8x100xf32>
      tpu.vector_store %arg3[%c0_14, %c0_15], %48 {strides = array<i32>} : memref<8x100xf32, #tpu.memory_space<vmem>>, vector<8x100xf32>,
    } else {
    }
    %c1_i32_10 = arith.constant 1 : i32
    %39 = arith.cmpi ne, %arg0, %c1_i32_10 : i32
    %40 = arith.extui %39 : i1 to i32
    %c0_i32_11 = arith.constant 0 : i32
    %41 = arith.cmpi ne, %40, %c0_i32_11 : i32
    scf.if %41 {
      %42 = vector.shape_cast %35 : vector<16x100xf32> to vector<2x8x100xf32>
      %cst_12 = arith.constant dense<0.000000e+00> : vector<8x100xf32>
      %43 = vector.multi_reduction <add>, %42, %cst_12 [0] : vector<2x8x100xf32> to vector<8x100xf32>
      %c0_13 = arith.constant 0 : index
      %c0_14 = arith.constant 0 : index
      %44 = vector.load %arg3[%c0_13, %c0_14] : memref<8x100xf32, #tpu.memory_space<vmem>>, vector<8x100xf32>
      tpu.vector_store %arg3[%c0_13, %c0_14], %43 {strides = array<i32>} : memref<8x100xf32, #tpu.memory_space<vmem>>, vector<8x100xf32>,
    } else {
    }
    return
  }
  func.func @transform_0(%arg0: i32) -> (i32, i32) {
    %c0_i32 = arith.constant 0 : i32
    %c0_i32_0 = arith.constant 0 : i32
    return %arg0, %c0_i32 : i32, i32
  }
  func.func @transform_1(%arg0: i32) -> (i32, i32) {
    %c0_i32 = arith.constant 0 : i32
    %c0_i32_0 = arith.constant 0 : i32
    return %arg0, %c0_i32 : i32, i32
  }
  func.func @transform_2(%arg0: i32) -> (i32, i32) {
    %c0_i32 = arith.constant 0 : i32
    %c0_i32_0 = arith.constant 0 : i32
    return %arg0, %c0_i32 : i32, i32
  }
}

</mosaic_0001>

<llo_original>
// kernel: tpu_custom_call.1
$region0: #{tpu_custom_call.1}
  #allocation0 [shape = 'u32[]', space=smem, size = 0x4, offset = 0x4, fixed_abs, tag = 'smem constant byte address 0x4 - core index']
  #allocation1 [shape = 'u32[144,128]{1,0:T(1,128)}', space=vmem, size = 0x12000, scoped, tag = 'internal scratch']
  %s0 = inlined_call_operand.hbm [shape: f32[19,100], index: 0, kind: input, shape index: {}]
  %s1 = inlined_call_operand.hbm [shape: f32[19,100], index: 1, kind: input, shape index: {}]
  %s2 = inlined_call_operand.hbm [shape: f32[16,100], index: 2, kind: output, shape index: {}]
  %s3 = sld [smem:[#allocation0]]
  $region57: #{tpu_custom_call.1} parent=0
    _
  %s5 = ssub.s32 1, %s3
  %s6 = scalar_select 0, %s5, %s3
  $region1: #{tpu_custom_call.1} parent=0
    #allocation2 [shape = 'u8[16384]{0}', space=vmem, size = 0x4000, scoped, tag = 'input window, operand 0']
    #allocation3 [shape = 's32[2]{0}', space=sflag, size = 0x8, scoped, tag = 'scoped memory for tpu_custom_call.1']
    #allocation4 [shape = 's32[2]{0}', space=sflag, size = 0x8, scoped, tag = 'scoped memory for tpu_custom_call.1']
    #allocation5 [shape = 'u8[16384]{0}', space=vmem, size = 0x4000, scoped, tag = 'input window, operand 1']
    #allocation6 [shape = 's32[2]{0}', space=sflag, size = 0x8, scoped, tag = 'scoped memory for tpu_custom_call.1']
    #allocation7 [shape = 'u8[8192]{0}', space=vmem, size = 0x2000, scoped, tag = 'output window, operand 0']
    %7 = vsyncpa [#allocation3], 0
    %s8 = scalar_lea.sflag [#allocation3], 1
    %9 = vsyncpa %s8, 0
    %10 = vsyncpa [#allocation6], 0
    %s11 = scalar_lea.sflag [#allocation6], 1
    %12 = vsyncpa %s11, 0
    %13 = vsyncpa [#allocation4], 0
    %s14 = scalar_lea.sflag [#allocation4], 1
    %15 = vsyncpa %s14, 0
    loop: start=0, step=1, limit=4
    $region2: #{tpu_custom_call.1} parent=1 // loop_pre_header
      _
    $region3: #{tpu_custom_call.1} parent=1 // loop_header
      %s17 = sphi 0, %s21
      %p18 = scmp.ge.s32.totalorder %s17, 4
      %s27 = sphi 0, %s29
      %s30 = sphi 0, %s27
      %s31 = sphi 0, %s30
      %s47 = sphi 0, %s31
      %s53 = sphi 0, %s55
      %s56 = sphi 0, %s53
      %s57 = sphi 0, %s56
      %s73 = sphi 0, %s57
      %s79 = sphi 0, %s81
      %s82 = sphi 0, %s79
      %s83 = sphi 0, %s82
      %s99 = sphi 0, %s83
    $region4: #{tpu_custom_call.1} parent=1 // loop_header_branch
      %20 = sbr.rel (%p18) target = $region8
    $region5: #{tpu_custom_call.1} parent=1 // loop_body
      %s22 = ssub.s32 %s17, 1
      %s23 = ssub.s32 %s17, 2
      %s24 = sadd.s32 %s17, 1
      %s25 = ssub.s32 %s17, %s24
      %p26 = scmp.eq.s32.totalorder %s25, 0
      %s28 = sadd.s32 %s27, 1
      %s29 = scalar_select %p26, %s27, %s28
      %p32 = pneg %p26
      %p33 = scmp.eq.s32.totalorder %s17, 1
      %p34 = por %p32, %p33
      %p35 = scmp.ne.s32.totalorder %s27, %s30
      %p36 = scmp.eq.s32.totalorder %s17, 0
      %p37 = por %p35, %p36
      %p38 = scmp.ne.s32.totalorder %s27, %s30
      %p39 = scmp.eq.s32.totalorder %s22, 1
      %p40 = por %p38, %p39
      %p41 = scmp.ne.s32.totalorder %s30, %s31
      %p42 = scmp.eq.s32.totalorder %s22, 0
      %p43 = por %p41, %p42
      %p44 = scmp.ne.s32.totalorder %s30, %s31
      %p45 = scmp.eq.s32.totalorder %s23, 1
      %p46 = por %p44, %p45
      %p48 = scmp.ne.s32.totalorder %s31, %s47
      %p49 = scmp.eq.s32.totalorder %s23, 0
      %p50 = por %p48, %p49
      %s51 = ssub.s32 %s17, %s24
      %p52 = scmp.eq.s32.totalorder %s51, 0
      %s54 = sadd.s32 %s53, 1
      %s55 = scalar_select %p52, %s53, %s54
      %p58 = pneg %p52
      %p59 = scmp.eq.s32.totalorder %s17, 1
      %p60 = por %p58, %p59
      %p61 = scmp.ne.s32.totalorder %s53, %s56
      %p62 = scmp.eq.s32.totalorder %s17, 0
      %p63 = por %p61, %p62
      %p64 = scmp.ne.s32.totalorder %s53, %s56
      %p65 = scmp.eq.s32.totalorder %s22, 1
      %p66 = por %p64, %p65
      %p67 = scmp.ne.s32.totalorder %s56, %s57
      %p68 = scmp.eq.s32.totalorder %s22, 0
      %p69 = por %p67, %p68
      %p70 = scmp.ne.s32.totalorder %s56, %s57
      %p71 = scmp.eq.s32.totalorder %s23, 1
      %p72 = por %p70, %p71
      %p74 = scmp.ne.s32.totalorder %s57, %s73
      %p75 = scmp.eq.s32.totalorder %s23, 0
      %p76 = por %p74, %p75
      %s77 = ssub.s32 %s17, %s24
      %p78 = scmp.eq.s32.totalorder %s77, 0
      %s80 = sadd.s32 %s79, 1
      %s81 = scalar_select %p78, %s79, %s80
      %p84 = pneg %p78
      %p85 = scmp.eq.s32.totalorder %s17, 1
      %p86 = por %p84, %p85
      %p87 = scmp.ne.s32.totalorder %s79, %s82
      %p88 = scmp.eq.s32.totalorder %s17, 0
      %p89 = por %p87, %p88
      %p90 = scmp.ne.s32.totalorder %s79, %s82
      %p91 = scmp.eq.s32.totalorder %s22, 1
      %p92 = por %p90, %p91
      %p93 = scmp.ne.s32.totalorder %s82, %s83
      %p94 = scmp.eq.s32.totalorder %s22, 0
      %p95 = por %p93, %p94
      %p96 = scmp.ne.s32.totalorder %s82, %s83
      %p97 = scmp.eq.s32.totalorder %s23, 1
      %p98 = por %p96, %p97
      %p100 = scmp.ne.s32.totalorder %s83, %s99
      %p101 = scmp.eq.s32.totalorder %s23, 0
      %p102 = por %p100, %p101
      %p103 = scmp.le.s32.totalorder 1, %s17
      %p104 = scmp.lt.s32.totalorder %s17, 3
      %p105 = pnand %p103, %p104
      %p106 = pneg %p105
      // Predicated region
      $region9: #{tpu_custom_call.1} parent=5 // pred_check
        _
      $region10: #{tpu_custom_call.1} parent=5 // pred_check_branch
        %108 = sbr.rel (%p105) target = $region12
      $region11: #{tpu_custom_call.1} parent=5 // pred_region
        %s109 = ssub.s32 %s17, 1
      $region12: #{tpu_custom_call.1} parent=5 // pred_fallthru
        _
      %p110 = scmp.lt.s32.totalorder %s17, 2
      // Predicated region
      $region13: #{tpu_custom_call.1} parent=5 // pred_check
        %p111 = pneg %p110
      $region14: #{tpu_custom_call.1} parent=5 // pred_check_branch
        %113 = sbr.rel (%p111) target = $region16
      $region15: #{tpu_custom_call.1} parent=5 // pred_region
        // Predicated region
        $region17: #{tpu_custom_call.1} parent=15 // pred_check
          %p114 = pneg %p37
        $region18: #{tpu_custom_call.1} parent=15 // pred_check_branch
          %116 = sbr.rel (%p114) target = $region20
        $region19: #{tpu_custom_call.1} parent=15 // pred_region
          %s117 = sand.u32 %s27, 1
          %s118 = scalar_lea.sflag [#allocation3], %s117
          %s119 = sand.u32 %s27, 1
          %s120 = smul.addr %s119, 16
          %s121 = scalar_lea.vmem [#allocation2], %s120
          %s122 = smul.u32 2, %s17
          %s123 = ssub.s32 3, %s122
          %p124 = scmp.lt.s32.totalorder %s123, 2
          %s125 = scalar_select %p124, %s123, 2
          %s126 = smul.u32 128, %s125
          %s128 = ssub.s32 256, %s126
          %129 = vsyncadd %s118, %s128
          %p130 = scmp.ne.s32.totalorder 0, %s126
          %s131 = smul.addr %s122, 128
          %s132 = scalar_lea.hbm %s0, %s131
          %s133 = smul.u32 8, %s125
          %s134 = sshll.u32 %s121, 4
          %s135 = int_to_ptr.vmem [resolvable:$true] %s134
          %s136 = sshll.u32 %s133, 4
          %140 = dma.hbm_to_vmem [thread:$0]  (%p130), %s132, %s136, %s135, %s118, 128, 128, 8
        $region20: #{tpu_custom_call.1} parent=15 // pred_fallthru
          _
        // Predicated region
        $region21: #{tpu_custom_call.1} parent=15 // pred_check
          %p141 = pneg %p63
        $region22: #{tpu_custom_call.1} parent=15 // pred_check_branch
          %143 = sbr.rel (%p141) target = $region24
        $region23: #{tpu_custom_call.1} parent=15 // pred_region
          %s144 = sand.u32 %s53, 1
          %s145 = scalar_lea.sflag [#allocation6], %s144
          %s146 = sand.u32 %s53, 1
          %s147 = smul.addr %s146, 16
          %s148 = scalar_lea.vmem [#allocation5], %s147
          %s149 = smul.u32 2, %s17
          %s150 = ssub.s32 3, %s149
          %p151 = scmp.lt.s32.totalorder %s150, 2
          %s152 = scalar_select %p151, %s150, 2
          %s153 = smul.u32 128, %s152
          %s155 = ssub.s32 256, %s153
          %156 = vsyncadd %s145, %s155
          %p157 = scmp.ne.s32.totalorder 0, %s153
          %s158 = smul.addr %s149, 128
          %s159 = scalar_lea.hbm %s1, %s158
          %s160 = smul.u32 8, %s152
          %s161 = sshll.u32 %s148, 4
          %s162 = int_to_ptr.vmem [resolvable:$true] %s161
          %s163 = sshll.u32 %s160, 4
          %167 = dma.hbm_to_vmem [thread:$0]  (%p157), %s159, %s163, %s162, %s145, 128, 128, 8
        $region24: #{tpu_custom_call.1} parent=15 // pred_fallthru
          _
      $region16: #{tpu_custom_call.1} parent=5 // pred_fallthru
        _
      %p168 = scmp.le.s32.totalorder 1, %s17
      %p169 = scmp.lt.s32.totalorder %s17, 3
      %p170 = pnand %p168, %p169
      %p171 = pneg %p170
      // Predicated region
      $region25: #{tpu_custom_call.1} parent=5 // pred_check
        _
      $region26: #{tpu_custom_call.1} parent=5 // pred_check_branch
        %173 = sbr.rel (%p170) target = $region28
      $region27: #{tpu_custom_call.1} parent=5 // pred_region
        %s174 = ssub.s32 %s17, 1
        %s175 = sand.u32 %s30, 1
        %s176 = scalar_lea.sflag [#allocation3], %s175
        %s177 = sand.u32 %s30, 1
        %s178 = smul.addr %s177, 16
        %s179 = scalar_lea.vmem [#allocation2], %s178
        // Predicated region
        $region29: #{tpu_custom_call.1} parent=27 // pred_check
          %p180 = pneg %p43
        $region30: #{tpu_custom_call.1} parent=27 // pred_check_branch
          %182 = sbr.rel (%p180) target = $region32
        $region31: #{tpu_custom_call.1} parent=27 // pred_region
          %183 = dma.done %s176, 256
        $region32: #{tpu_custom_call.1} parent=27 // pred_fallthru
          _
        %s184 = sand.u32 %s56, 1
        %s185 = scalar_lea.sflag [#allocation6], %s184
        %s186 = sand.u32 %s56, 1
        %s187 = smul.addr %s186, 16
        %s188 = scalar_lea.vmem [#allocation5], %s187
        // Predicated region
        $region33: #{tpu_custom_call.1} parent=27 // pred_check
          %p189 = pneg %p69
        $region34: #{tpu_custom_call.1} parent=27 // pred_check_branch
          %191 = sbr.rel (%p189) target = $region36
        $region35: #{tpu_custom_call.1} parent=27 // pred_region
          %192 = dma.done %s185, 256
        $region36: #{tpu_custom_call.1} parent=27 // pred_fallthru
          _
        %s193 = sand.u32 %s30, 1
        %s194 = scalar_lea.sflag [#allocation3], %s193
        %s195 = sand.u32 %s30, 1
        %s196 = smul.addr %s195, 16
        %s197 = scalar_lea.vmem [#allocation2], %s196
        %p198 = pneg %p43
        %p199 = pneg %p40
        %s200 = sand.u32 %s56, 1
        %s201 = scalar_lea.sflag [#allocation6], %s200
        %s202 = sand.u32 %s56, 1
        %s203 = smul.addr %s202, 16
        %s204 = scalar_lea.vmem [#allocation5], %s203
        %p205 = pneg %p69
        %p206 = pneg %p66
        %p207 = pneg %p95
        %p208 = pneg %p92
        %s209 = sand.u32 %s82, 1
        %s210 = scalar_lea.sflag [#allocation4], %s209
        %s211 = sand.u32 %s82, 1
        %s212 = smul.addr %s211, 8
        %s213 = scalar_lea.vmem [#allocation7], %s212
        %s214 = smul.u32 2, %s22
        %s215 = ssub.s32 3, %s214
        %p216 = scmp.lt.s32.totalorder %s215, 2
        %s217 = scalar_select %p216, %s215, 2
        %s218 = smul.u32 128, %s217
        %s219 = smul.u32 2, %s22
        %s220 = ssub.s32 3, %s219
        %p221 = scmp.lt.s32.totalorder %s220, 2
        %s222 = scalar_select %p221, %s220, 2
        %s223 = smul.u32 128, %s222
        %v224 = vld [vmem:[%s179] sm:$0xff]
        %v225 = vld [vmem:[%s179 + $0x8] sm:$0xff]
        %v226 = vld [vmem:[%s188] sm:$0xff]
        %v227 = vld [vmem:[%s188 + $0x8] sm:$0xff]
        %v228 = vand.u32 2147483647, %v224
        %v229 = vand.u32 2147483647, %v225
        %v230 = vsub.f32 0.0, %v228
        %v231 = vsub.f32 0.0, %v229
        %v232 = vmul.f32 %v230, 1.442695
        %v233 = vpow.pop %v232
        %v234 = vmul.f32 %v231, 1.442695
        %v235 = vpow.pop %v234
        %v236 = vadd.f32 %v233, 1.0
        %v237 = vlog2.pop %v236
        %v238 = vmul.f32 %v237, 0.6931472
        %v239 = vmul.f32 -0.5, %v233
        %v240 = vadd.f32 %v239, 1.0
        %v241 = vmul.f32 %v240, %v233
        %v242 = vand.u32 2147483647, %v233
        %vm243 = vcmp.lt.f32.partialorder %v242, 0.0004427343
        %v244 = vsel %vm243, %v241, %v238
        %v245 = vadd.f32 %v235, 1.0
        %v246 = vlog2.pop %v245
        %v247 = vmul.f32 %v246, 0.6931472
        %v248 = vmul.f32 -0.5, %v235
        %v249 = vadd.f32 %v248, 1.0
        %v250 = vmul.f32 %v249, %v235
        %v251 = vand.u32 2147483647, %v235
        %vm252 = vcmp.lt.f32.partialorder %v251, 0.0004427343
        %v253 = vsel %vm252, %v250, %v247
        %v254 = vsub.f32 0.0, %v224
        %v255 = vsub.f32 0.0, %v225
        %v256 = vmax.f32 %v254, 0.0
        %v257 = vmax.f32 %v255, 0.0
        %v258 = vadd.f32 %v244, %v256
        %v259 = vadd.f32 %v253, %v257
        %v260 = vsub.f32 1.0, %v226
        %v261 = vsub.f32 1.0, %v227
        %v262 = vmul.f32 %v226, 0.5
        %v263 = vmul.f32 %v227, 0.5
        %v264 = vadd.f32 %v262, 1.0
        %v265 = vadd.f32 %v263, 1.0
        %v266 = vmul.f32 %v260, %v224
        %v267 = vmul.f32 %v261, %v225
        %v268 = vmul.f32 %v264, %v258
        %v269 = vmul.f32 %v265, %v259
        %v270 = vadd.f32 %v266, %v268
        %v271 = vadd.f32 %v267, %v269
        %v272 = vadd.f32 %v233, 1.0
        %v273 = vadd.f32 %v235, 1.0
        %v274 = vrcp.pop %v272
        %v275 = vrcp.pop %v273
        %vm276 = vcmp.ge.f32.partialorder %v224, 0.0
        %vm277 = vcmp.ge.f32.partialorder %v225, 0.0
        %v278 = vmul.f32 %v233, %v274
        %v279 = vmul.f32 %v235, %v275
        %v280 = vsel %vm276, %v274, %v278
        %v281 = vsel %vm277, %v275, %v279
        %v282 = vsel %vm276, %v278, %v274
        %v283 = vsel %vm277, %v279, %v275
        %v284 = vmul.f32 %v282, %v282
        %v285 = vmul.f32 %v283, %v283
        %v286 = vmul.f32 %v226, %v284
        %v287 = vmul.f32 %v227, %v285
        %v288 = vmul.f32 %v280, %v280
        %v289 = vmul.f32 %v281, %v281
        %v290 = vmul.f32 %v260, %v288
        %v291 = vmul.f32 %v261, %v289
        %v292 = vadd.f32 %v286, %v290
        %v293 = vadd.f32 %v287, %v291
        %v294 = vmul.f32 %v270, %v292
        %v295 = vmul.f32 %v271, %v293
        %p296 = scmp.eq.s32.totalorder %s22, 1
        // Predicated region
        $region37: #{tpu_custom_call.1} parent=27 // pred_check
          %p297 = pneg %p296
        $region38: #{tpu_custom_call.1} parent=27 // pred_check_branch
          %299 = sbr.rel (%p297) target = $region40
        $region39: #{tpu_custom_call.1} parent=27 // pred_region
          %v300 = vlaneseq
          %v301 = vshrl.u32 %v300, 7
          %v302 = vadd.s32 %v301, 8
          %vm303 = vcmp.lt.s32.totalorder %v301, 3
          %vm304 = vcmp.lt.s32.totalorder %v302, 3
          %v305 = vsel %vm303, %v294, 0.0
          %v306 = vsel %vm304, %v295, 0.0
          %vm307 = vcmask 818176
          %v308 = vsel %vm307, %v305, 0.0
          %v309 = vsel %vm307, %v306, 0.0
          %v310 = vadd.f32 %v308, %v309
          %311 = vst.msk [vmem:[%s213] sm:$0xff] %vm307, %v310
        $region40: #{tpu_custom_call.1} parent=27 // pred_fallthru
          _
        %p312 = scmp.ne.s32.totalorder %s22, 1
        // Predicated region
        $region41: #{tpu_custom_call.1} parent=27 // pred_check
          %p313 = pneg %p312
        $region42: #{tpu_custom_call.1} parent=27 // pred_check_branch
          %315 = sbr.rel (%p313) target = $region44
        $region43: #{tpu_custom_call.1} parent=27 // pred_region
          %vm316 = vcmask 818176
          %v317 = vsel %vm316, %v294, 0.0
          %v318 = vsel %vm316, %v295, 0.0
          %v319 = vadd.f32 %v317, %v318
          %320 = vst.msk [vmem:[%s213] sm:$0xff] %vm316, %v319
        $region44: #{tpu_custom_call.1} parent=27 // pred_fallthru
          _
        %s321 = sand.u32 %s82, 1
        %s322 = scalar_lea.sflag [#allocation4], %s321
        %s323 = sand.u32 %s82, 1
        %s324 = smul.addr %s323, 8
        %s325 = scalar_lea.vmem [#allocation7], %s324
        // Predicated region
        $region45: #{tpu_custom_call.1} parent=27 // pred_check
          %p326 = pneg %p92
        $region46: #{tpu_custom_call.1} parent=27 // pred_check_branch
          %328 = sbr.rel (%p326) target = $region48
        $region47: #{tpu_custom_call.1} parent=27 // pred_region
          %s330 = ssub.s32 128, 128
          %331 = vsyncadd %s322, %s330
          %s332 = smul.addr %s22, 128
          %s333 = scalar_lea.hbm %s2, %s332
          %s335 = sshll.u32 %s325, 4
          %s336 = int_to_ptr.vmem [resolvable:$true] %s335
          %338 = dma.vmem_to_hbm [thread:$0]  %s336, 128, %s333, %s322
        $region48: #{tpu_custom_call.1} parent=27 // pred_fallthru
          _
      $region28: #{tpu_custom_call.1} parent=5 // pred_fallthru
        _
      %p339 = scmp.le.s32.totalorder 2, %s17
      // Predicated region
      $region49: #{tpu_custom_call.1} parent=5 // pred_check
        %p340 = pneg %p339
      $region50: #{tpu_custom_call.1} parent=5 // pred_check_branch
        %342 = sbr.rel (%p340) target = $region52
      $region51: #{tpu_custom_call.1} parent=5 // pred_region
        %s343 = ssub.s32 %s17, 2
        // Predicated region
        $region53: #{tpu_custom_call.1} parent=51 // pred_check
          %p344 = pneg %p98
        $region54: #{tpu_custom_call.1} parent=51 // pred_check_branch
          %346 = sbr.rel (%p344) target = $region56
        $region55: #{tpu_custom_call.1} parent=51 // pred_region
          %s347 = sand.u32 %s83, 1
          %s348 = scalar_lea.sflag [#allocation4], %s347
          %s349 = sand.u32 %s83, 1
          %s350 = smul.addr %s349, 8
          %s351 = scalar_lea.vmem [#allocation7], %s350
          %352 = dma.done %s348, 128
        $region56: #{tpu_custom_call.1} parent=51 // pred_fallthru
          _
      $region52: #{tpu_custom_call.1} parent=5 // pred_fallthru
        _
    $region6: #{tpu_custom_call.1} parent=1 // loop_footer
      %s21 = sadd.s32 1, %s17
    $region7: #{tpu_custom_call.1} parent=1 // loop_footer_branch
      %16 = sbr.rel target = $region3
    $region8: #{tpu_custom_call.1} parent=1 // loop_exit
      _
    %353 = vsyncpa [#allocation3], 1
    %s354 = scalar_lea.sflag [#allocation3], 1
    %355 = vsyncpa %s354, 1
    %356 = vsyncpa [#allocation6], 1
    %s357 = scalar_lea.sflag [#allocation6], 1
    %358 = vsyncpa %s357, 1
    %359 = vsyncpa [#allocation4], 1
    %s360 = scalar_lea.sflag [#allocation4], 1
    %361 = vsyncpa %s360, 1

</llo_original>
